<compile_context>
chip_gen: v5e
topology: v5e:2x2
jax: 0.10.0
libtpu: 0.0.40
codegen_flags: <defaults>
</compile_context>

<pallas_src>
import functools

import jax
import jax.numpy as jnp
from jax.experimental import pallas as pl
from jax.experimental.pallas import tpu as pltpu


def _round_up(x, m):
    return ((x + m - 1) // m) * m


def mlp_kernel(x_ref,
               w0, b0, w1, b1, w2, b2, w3, b3, w4, b4, w5, b5,
               o_ref):
    # x_ref is bf16; matmuls take bf16 inputs, accumulate in f32.
    # Bias add / ReLU / log_softmax run in f32.
    def layer(h_bf16, w_ref, b_ref, relu):
        acc = jnp.dot(h_bf16, w_ref[...],
                      preferred_element_type=jnp.float32) + b_ref[...]
        if relu:
            acc = jnp.maximum(acc, 0.0)
        return acc

    h = layer(x_ref[...], w0, b0, relu=True)                      # (B, 128)
    h = layer(h.astype(jnp.bfloat16), w1, b1, relu=True)          # (B, 64)
    h = layer(h.astype(jnp.bfloat16), w2, b2, relu=True)          # (B, 10)
    h = layer(h.astype(jnp.bfloat16), w3, b3, relu=True)          # (B, 10)
    h = layer(h.astype(jnp.bfloat16), w4, b4, relu=True)          # (B, 10)
    logits = layer(h.astype(jnp.bfloat16), w5, b5, relu=False)    # (B, 10)

    # log_softmax over dim=1 (class dim), numerically stable.
    m = jnp.max(logits, axis=1, keepdims=True)
    shifted = logits - m
    lse = jnp.log(jnp.sum(jnp.exp(shifted), axis=1, keepdims=True))
    o_ref[...] = (shifted - lse).astype(o_ref.dtype)


@functools.partial(jax.jit, static_argnums=(2,))
def _model5_forward_impl(x2, flat_params, tile_b):
    B, image_size = x2.shape

    # Tile the batch; pad rows to a multiple of tile_b (>= 8 for sublane rule).
    tb = min(tile_b, _round_up(B, 8))
    b_pad = _round_up(B, tb)
    if b_pad != B:
        x2 = jnp.pad(x2, ((0, b_pad - B), (0, 0)))
    x_bf16 = x2.astype(jnp.bfloat16)

    grid = (b_pad // tb,)

    # x: tiled over batch; weights/biases: full-shape, VMEM-resident blocks.
    in_specs = [pl.BlockSpec((tb, image_size), lambda i: (i, 0))]
    for p in flat_params:
        in_specs.append(pl.BlockSpec(p.shape, lambda i: (0, 0)))
    out_spec = pl.BlockSpec((tb, 10), lambda i: (i, 0))

    # Rough cost hint: layer0 dominates FLOPs; x stream dominates bytes.
    flops = 2 * b_pad * (image_size * 128 + 128 * 64 + 64 * 10 + 3 * 10 * 10)
    param_bytes = sum(int(p.size) * p.dtype.itemsize for p in flat_params)
    bytes_accessed = int(x_bf16.size) * 2 + param_bytes + b_pad * 10 * 4
    cost = pl.CostEstimate(flops=flops, transcendentals=b_pad * 10,
                           bytes_accessed=bytes_accessed)

    out = pl.pallas_call(
        mlp_kernel,
        out_shape=jax.ShapeDtypeStruct((b_pad, 10), jnp.float32),
        grid=grid,
        in_specs=in_specs,
        out_specs=out_spec,
        compiler_params=pltpu.CompilerParams(
            dimension_semantics=("parallel",)),
        cost_estimate=cost,
    )(x_bf16, *flat_params)

    return out[:B]


def model5_forward(x, params, tile_b=512):
    """x: (B, C, H, W) or (B, image_size). params: list of (W, b) pairs with
    W stored as (in_features, out_features) so the kernel computes x @ W + b
    (same math as nn.Linear with W_torch = W.T)."""
    image_size = params[0][0].shape[0]
    x2 = x.reshape(-1, image_size).astype(jnp.float32)

    flat_params = []
    for (w, b) in params:
        flat_params.append(w.astype(jnp.bfloat16))           # MXU input dtype
        flat_params.append(b.reshape(1, -1).astype(jnp.float32))  # f32 bias add

    return _model5_forward_impl(x2, tuple(flat_params), int(tile_b))


def init_params(key, image_size):
    """Deterministic synthetic init matching Model5's layer shapes."""
    sizes = [(image_size, 128), (128, 64), (64, 10), (10, 10), (10, 10), (10, 10)]
    params = []
    for (fan_in, fan_out) in sizes:
        kw, kb, key = jax.random.split(key, 3)
        bound = 1.0 / jnp.sqrt(fan_in)
        w = jax.random.uniform(kw, (fan_in, fan_out), jnp.float32, -bound, bound)
        b = jax.random.uniform(kb, (fan_out,), jnp.float32, -bound, bound)
        params.append((w, b))
    return params


def reference_forward(x, params):
    image_size = params[0][0].shape[0]
    h = x.reshape(-1, image_size).astype(jnp.float32)
    for i, (w, b) in enumerate(params):
        h = h @ w + b
        if i < len(params) - 1:
            h = jnp.maximum(h, 0.0)
    return jax.nn.log_softmax(h, axis=1)


if __name__ == "__main__":
    key = jax.random.PRNGKey(0)
    kx, kp = jax.random.split(key)

    # Small NCHW input; image_size = C*H*W = 4*16*16 = 1024
    x = jax.random.normal(kx, (2, 4, 16, 16), jnp.float32)
    image_size = 4 * 16 * 16
    params = init_params(kp, image_size)

    out = model5_forward(x, params)
    out = jax.block_until_ready(out)

    ref = reference_forward(x, params)
    assert out.shape == (2, 10)
    # Tolerance loosened vs f32-only version: matmul inputs are bf16
    # (accumulation stays f32), per the perf guidance.
    assert jnp.allclose(out, ref, atol=2e-2, rtol=2e-2), "mismatch vs reference"
    print("KERNEL_OK")
</pallas_src>

<mosaic_0001>
module attributes {stable_mosaic.version = 11 : i64} {
  func.func @mlp_kernel(%arg0: i32, %arg1: memref<8x1024xbf16, #tpu.memory_space<vmem>>, %arg2: memref<1024x128xbf16, #tpu.memory_space<vmem>>, %arg3: memref<1x128xf32, #tpu.memory_space<vmem>>, %arg4: memref<128x64xbf16, #tpu.memory_space<vmem>>, %arg5: memref<1x64xf32, #tpu.memory_space<vmem>>, %arg6: memref<64x10xbf16, #tpu.memory_space<vmem>>, %arg7: memref<1x10xf32, #tpu.memory_space<vmem>>, %arg8: memref<10x10xbf16, #tpu.memory_space<vmem>>, %arg9: memref<1x10xf32, #tpu.memory_space<vmem>>, %arg10: memref<10x10xbf16, #tpu.memory_space<vmem>>, %arg11: memref<1x10xf32, #tpu.memory_space<vmem>>, %arg12: memref<10x10xbf16, #tpu.memory_space<vmem>>, %arg13: memref<1x10xf32, #tpu.memory_space<vmem>>, %arg14: memref<8x10xf32, #tpu.memory_space<vmem>>) attributes {dimension_semantics = [#tpu.dimension_semantics<parallel>], iteration_bounds = array<i64: 1>, scalar_prefetch = 0 : i64, scratch_operands = 0 : i64, tpu.core_type = #tpu.core_type<tc>, window_params = [{transform_indices = @transform_0, window_bounds = array<i64: 8, 1024>}, {pipeline_mode = #tpu.pipeline_mode<synchronous>, transform_indices = @transform_1, window_bounds = array<i64: 1024, 128>}, {pipeline_mode = #tpu.pipeline_mode<synchronous>, transform_indices = @transform_2, window_bounds = array<i64: 1, 128>}, {pipeline_mode = #tpu.pipeline_mode<synchronous>, transform_indices = @transform_3, window_bounds = array<i64: 128, 64>}, {pipeline_mode = #tpu.pipeline_mode<synchronous>, transform_indices = @transform_4, window_bounds = array<i64: 1, 64>}, {pipeline_mode = #tpu.pipeline_mode<synchronous>, transform_indices = @transform_5, window_bounds = array<i64: 64, 10>}, {pipeline_mode = #tpu.pipeline_mode<synchronous>, transform_indices = @transform_6, window_bounds = array<i64: 1, 10>}, {pipeline_mode = #tpu.pipeline_mode<synchronous>, transform_indices = @transform_7, window_bounds = array<i64: 10, 10>}, {pipeline_mode = #tpu.pipeline_mode<synchronous>, transform_indices = @transform_8, window_bounds = array<i64: 1, 10>}, {pipeline_mode = #tpu.pipeline_mode<synchronous>, transform_indices = @transform_9, window_bounds = array<i64: 10, 10>}, {pipeline_mode = #tpu.pipeline_mode<synchronous>, transform_indices = @transform_10, window_bounds = array<i64: 1, 10>}, {pipeline_mode = #tpu.pipeline_mode<synchronous>, transform_indices = @transform_11, window_bounds = array<i64: 10, 10>}, {pipeline_mode = #tpu.pipeline_mode<synchronous>, transform_indices = @transform_12, window_bounds = array<i64: 1, 10>}, {transform_indices = @transform_13, window_bounds = array<i64: 8, 10>}]} {
    %c0 = arith.constant 0 : index
    %c0_0 = arith.constant 0 : index
    %0 = vector.load %arg1[%c0, %c0_0] : memref<8x1024xbf16, #tpu.memory_space<vmem>>, vector<8x1024xbf16>
    %c0_1 = arith.constant 0 : index
    %c0_2 = arith.constant 0 : index
    %1 = vector.load %arg2[%c0_1, %c0_2] : memref<1024x128xbf16, #tpu.memory_space<vmem>>, vector<1024x128xbf16>
    %cst = arith.constant dense<0.000000e+00> : vector<8x128xf32>
    %2 = tpu.matmul %0, %1, %cst {dimension_numbers = #tpu.dot_dimension_numbers<[1], [0], [0], [1], [0, 0, 1, 1], [], []>} : vector<8x1024xbf16>, vector<1024x128xbf16>, vector<8x128xf32> -> vector<8x128xf32>
    %c0_3 = arith.constant 0 : index
    %c0_4 = arith.constant 0 : index
    %3 = vector.load %arg3[%c0_3, %c0_4] : memref<1x128xf32, #tpu.memory_space<vmem>>, vector<1x128xf32>
    %4 = vector.broadcast %3 : vector<1x128xf32> to vector<8x128xf32>
    %5 = arith.addf %2, %4 : vector<8x128xf32>
    %cst_5 = arith.constant 0.000000e+00 : f32
    %6 = vector.broadcast %cst_5 : f32 to vector<8x128xf32>
    %7 = arith.maximumf %5, %6 : vector<8x128xf32>
    %8 = arith.truncf %7 : vector<8x128xf32> to vector<8x128xbf16>
    %c0_6 = arith.constant 0 : index
    %c0_7 = arith.constant 0 : index
    %9 = vector.load %arg4[%c0_6, %c0_7] : memref<128x64xbf16, #tpu.memory_space<vmem>>, vector<128x64xbf16>
    %cst_8 = arith.constant dense<0.000000e+00> : vector<8x64xf32>
    %10 = tpu.matmul %8, %9, %cst_8 {dimension_numbers = #tpu.dot_dimension_numbers<[1], [0], [0], [1], [0, 0, 1, 1], [], []>} : vector<8x128xbf16>, vector<128x64xbf16>, vector<8x64xf32> -> vector<8x64xf32>
    %c0_9 = arith.constant 0 : index
    %c0_10 = arith.constant 0 : index
    %11 = vector.load %arg5[%c0_9, %c0_10] : memref<1x64xf32, #tpu.memory_space<vmem>>, vector<1x64xf32>
    %12 = vector.broadcast %11 : vector<1x64xf32> to vector<8x64xf32>
    %13 = arith.addf %10, %12 : vector<8x64xf32>
    %cst_11 = arith.constant 0.000000e+00 : f32
    %14 = vector.broadcast %cst_11 : f32 to vector<8x64xf32>
    %15 = arith.maximumf %13, %14 : vector<8x64xf32>
    %16 = arith.truncf %15 : vector<8x64xf32> to vector<8x64xbf16>
    %c0_12 = arith.constant 0 : index
    %c0_13 = arith.constant 0 : index
    %17 = vector.load %arg6[%c0_12, %c0_13] : memref<64x10xbf16, #tpu.memory_space<vmem>>, vector<64x10xbf16>
    %cst_14 = arith.constant dense<0.000000e+00> : vector<8x10xf32>
    %18 = tpu.matmul %16, %17, %cst_14 {dimension_numbers = #tpu.dot_dimension_numbers<[1], [0], [0], [1], [0, 0, 1, 1], [], []>} : vector<8x64xbf16>, vector<64x10xbf16>, vector<8x10xf32> -> vector<8x10xf32>
    %c0_15 = arith.constant 0 : index
    %c0_16 = arith.constant 0 : index
    %19 = vector.load %arg7[%c0_15, %c0_16] : memref<1x10xf32, #tpu.memory_space<vmem>>, vector<1x10xf32>
    %20 = vector.broadcast %19 : vector<1x10xf32> to vector<8x10xf32>
    %21 = arith.addf %18, %20 : vector<8x10xf32>
    %cst_17 = arith.constant 0.000000e+00 : f32
    %22 = vector.broadcast %cst_17 : f32 to vector<8x10xf32>
    %23 = arith.maximumf %21, %22 : vector<8x10xf32>
    %24 = arith.truncf %23 : vector<8x10xf32> to vector<8x10xbf16>
    %c0_18 = arith.constant 0 : index
    %c0_19 = arith.constant 0 : index
    %25 = vector.load %arg8[%c0_18, %c0_19] : memref<10x10xbf16, #tpu.memory_space<vmem>>, vector<10x10xbf16>
    %cst_20 = arith.constant dense<0.000000e+00> : vector<8x10xf32>
    %26 = tpu.matmul %24, %25, %cst_20 {dimension_numbers = #tpu.dot_dimension_numbers<[1], [0], [0], [1], [0, 0, 1, 1], [], []>} : vector<8x10xbf16>, vector<10x10xbf16>, vector<8x10xf32> -> vector<8x10xf32>
    %c0_21 = arith.constant 0 : index
    %c0_22 = arith.constant 0 : index
    %27 = vector.load %arg9[%c0_21, %c0_22] : memref<1x10xf32, #tpu.memory_space<vmem>>, vector<1x10xf32>
    %28 = vector.broadcast %27 : vector<1x10xf32> to vector<8x10xf32>
    %29 = arith.addf %26, %28 : vector<8x10xf32>
    %cst_23 = arith.constant 0.000000e+00 : f32
    %30 = vector.broadcast %cst_23 : f32 to vector<8x10xf32>
    %31 = arith.maximumf %29, %30 : vector<8x10xf32>
    %32 = arith.truncf %31 : vector<8x10xf32> to vector<8x10xbf16>
    %c0_24 = arith.constant 0 : index
    %c0_25 = arith.constant 0 : index
    %33 = vector.load %arg10[%c0_24, %c0_25] : memref<10x10xbf16, #tpu.memory_space<vmem>>, vector<10x10xbf16>
    %cst_26 = arith.constant dense<0.000000e+00> : vector<8x10xf32>
    %34 = tpu.matmul %32, %33, %cst_26 {dimension_numbers = #tpu.dot_dimension_numbers<[1], [0], [0], [1], [0, 0, 1, 1], [], []>} : vector<8x10xbf16>, vector<10x10xbf16>, vector<8x10xf32> -> vector<8x10xf32>
    %c0_27 = arith.constant 0 : index
    %c0_28 = arith.constant 0 : index
    %35 = vector.load %arg11[%c0_27, %c0_28] : memref<1x10xf32, #tpu.memory_space<vmem>>, vector<1x10xf32>
    %36 = vector.broadcast %35 : vector<1x10xf32> to vector<8x10xf32>
    %37 = arith.addf %34, %36 : vector<8x10xf32>
    %cst_29 = arith.constant 0.000000e+00 : f32
    %38 = vector.broadcast %cst_29 : f32 to vector<8x10xf32>
    %39 = arith.maximumf %37, %38 : vector<8x10xf32>
    %40 = arith.truncf %39 : vector<8x10xf32> to vector<8x10xbf16>
    %c0_30 = arith.constant 0 : index
    %c0_31 = arith.constant 0 : index
    %41 = vector.load %arg12[%c0_30, %c0_31] : memref<10x10xbf16, #tpu.memory_space<vmem>>, vector<10x10xbf16>
    %cst_32 = arith.constant dense<0.000000e+00> : vector<8x10xf32>
    %42 = tpu.matmul %40, %41, %cst_32 {dimension_numbers = #tpu.dot_dimension_numbers<[1], [0], [0], [1], [0, 0, 1, 1], [], []>} : vector<8x10xbf16>, vector<10x10xbf16>, vector<8x10xf32> -> vector<8x10xf32>
    %c0_33 = arith.constant 0 : index
    %c0_34 = arith.constant 0 : index
    %43 = vector.load %arg13[%c0_33, %c0_34] : memref<1x10xf32, #tpu.memory_space<vmem>>, vector<1x10xf32>
    %44 = vector.broadcast %43 : vector<1x10xf32> to vector<8x10xf32>
    %45 = arith.addf %42, %44 : vector<8x10xf32>
    %cst_35 = arith.constant dense<0xFF800000> : vector<8xf32>
    %46 = vector.multi_reduction <maximumf>, %45, %cst_35 [1] : vector<8x10xf32> to vector<8xf32>
    %47 = vector.shape_cast %46 : vector<8xf32> to vector<8x1xf32>
    %48 = vector.broadcast %47 : vector<8x1xf32> to vector<8x10xf32>
    %49 = arith.subf %45, %48 : vector<8x10xf32>
    %50 = math.exp %49 : vector<8x10xf32>
    %cst_36 = arith.constant dense<0.000000e+00> : vector<8xf32>
    %51 = vector.multi_reduction <add>, %50, %cst_36 [1] : vector<8x10xf32> to vector<8xf32>
    %52 = vector.shape_cast %51 : vector<8xf32> to vector<8x1xf32>
    %53 = math.log %52 : vector<8x1xf32>
    %54 = vector.broadcast %53 : vector<8x1xf32> to vector<8x10xf32>
    %55 = arith.subf %49, %54 : vector<8x10xf32>
    %c0_37 = arith.constant 0 : index
    %c0_38 = arith.constant 0 : index
    %56 = vector.load %arg14[%c0_37, %c0_38] : memref<8x10xf32, #tpu.memory_space<vmem>>, vector<8x10xf32>
    tpu.vector_store %arg14[%c0_37, %c0_38], %55 {strides = array<i32>} : memref<8x10xf32, #tpu.memory_space<vmem>>, vector<8x10xf32>,
    return
  }
  func.func @transform_0(%arg0: i32) -> (i32, i32) {
    %c0_i32 = arith.constant 0 : i32
    %c0_i32_0 = arith.constant 0 : i32
    return %arg0, %c0_i32 : i32, i32
  }
  func.func @transform_1(%arg0: i32) -> (i32, i32) {
    %c0_i32 = arith.constant 0 : i32
    %c0_i32_0 = arith.constant 0 : i32
    %c0_i32_1 = arith.constant 0 : i32
    return %c0_i32, %c0_i32_0 : i32, i32
  }
  func.func @transform_2(%arg0: i32) -> (i32, i32) {
    %c0_i32 = arith.constant 0 : i32
    %c0_i32_0 = arith.constant 0 : i32
    %c0_i32_1 = arith.constant 0 : i32
    return %c0_i32, %c0_i32_0 : i32, i32
  }
  func.func @transform_3(%arg0: i32) -> (i32, i32) {
    %c0_i32 = arith.constant 0 : i32
    %c0_i32_0 = arith.constant 0 : i32
    %c0_i32_1 = arith.constant 0 : i32
    return %c0_i32, %c0_i32_0 : i32, i32
  }
  func.func @transform_4(%arg0: i32) -> (i32, i32) {
    %c0_i32 = arith.constant 0 : i32
    %c0_i32_0 = arith.constant 0 : i32
    %c0_i32_1 = arith.constant 0 : i32
    return %c0_i32, %c0_i32_0 : i32, i32
  }
  func.func @transform_5(%arg0: i32) -> (i32, i32) {
    %c0_i32 = arith.constant 0 : i32
    %c0_i32_0 = arith.constant 0 : i32
    %c0_i32_1 = arith.constant 0 : i32
    return %c0_i32, %c0_i32_0 : i32, i32
  }
  func.func @transform_6(%arg0: i32) -> (i32, i32) {
    %c0_i32 = arith.constant 0 : i32
    %c0_i32_0 = arith.constant 0 : i32
    %c0_i32_1 = arith.constant 0 : i32
    return %c0_i32, %c0_i32_0 : i32, i32
  }
  func.func @transform_7(%arg0: i32) -> (i32, i32) {
    %c0_i32 = arith.constant 0 : i32
    %c0_i32_0 = arith.constant 0 : i32
    %c0_i32_1 = arith.constant 0 : i32
    return %c0_i32, %c0_i32_0 : i32, i32
  }
  func.func @transform_8(%arg0: i32) -> (i32, i32) {
    %c0_i32 = arith.constant 0 : i32
    %c0_i32_0 = arith.constant 0 : i32
    %c0_i32_1 = arith.constant 0 : i32
    return %c0_i32, %c0_i32_0 : i32, i32
  }
  func.func @transform_9(%arg0: i32) -> (i32, i32) {
    %c0_i32 = arith.constant 0 : i32
    %c0_i32_0 = arith.constant 0 : i32
    %c0_i32_1 = arith.constant 0 : i32
    return %c0_i32, %c0_i32_0 : i32, i32
  }
  func.func @transform_10(%arg0: i32) -> (i32, i32) {
    %c0_i32 = arith.constant 0 : i32
    %c0_i32_0 = arith.constant 0 : i32
    %c0_i32_1 = arith.constant 0 : i32
    return %c0_i32, %c0_i32_0 : i32, i32
  }
  func.func @transform_11(%arg0: i32) -> (i32, i32) {
    %c0_i32 = arith.constant 0 : i32
    %c0_i32_0 = arith.constant 0 : i32
    %c0_i32_1 = arith.constant 0 : i32
    return %c0_i32, %c0_i32_0 : i32, i32
  }
  func.func @transform_12(%arg0: i32) -> (i32, i32) {
    %c0_i32 = arith.constant 0 : i32
    %c0_i32_0 = arith.constant 0 : i32
    %c0_i32_1 = arith.constant 0 : i32
    return %c0_i32, %c0_i32_0 : i32, i32
  }
  func.func @transform_13(%arg0: i32) -> (i32, i32) {
    %c0_i32 = arith.constant 0 : i32
    %c0_i32_0 = arith.constant 0 : i32
    return %arg0, %c0_i32 : i32, i32
  }
}

</mosaic_0001>

<llo_original>
// kernel: _model5_forward_impl.1
$region0: #{_model5_forward_impl.1}
  #allocation0 [shape = 'u32[]', space=smem, size = 0x4, offset = 0x4, fixed_abs, tag = 'smem constant byte address 0x4 - core index']
  #allocation1 [shape = 'u32[72,128]{1,0:T(1,128)}', space=vmem, size = 0x9000, scoped, tag = 'internal scratch']
  %s0 = inlined_call_operand.vmem [shape: bf16[8,1024], index: 0, kind: input, shape index: {}]
  %s1 = inlined_call_operand.hbm [shape: bf16[1024,128], index: 1, kind: input, shape index: {}]
  %s2 = inlined_call_operand.vmem [shape: f32[1,128], index: 2, kind: input, shape index: {}]
  %s3 = inlined_call_operand.vmem [shape: bf16[128,64], index: 3, kind: input, shape index: {}]
  %s4 = inlined_call_operand.vmem [shape: f32[1,64], index: 4, kind: input, shape index: {}]
  %s5 = inlined_call_operand.vmem [shape: bf16[64,10], index: 5, kind: input, shape index: {}]
  %s6 = inlined_call_operand.vmem [shape: f32[1,10], index: 6, kind: input, shape index: {}]
  %s7 = inlined_call_operand.vmem [shape: bf16[10,10], index: 7, kind: input, shape index: {}]
  %s8 = inlined_call_operand.vmem [shape: f32[1,10], index: 8, kind: input, shape index: {}]
  %s9 = inlined_call_operand.vmem [shape: bf16[10,10], index: 9, kind: input, shape index: {}]
  %s10 = inlined_call_operand.vmem [shape: f32[1,10], index: 10, kind: input, shape index: {}]
  %s11 = inlined_call_operand.vmem [shape: bf16[10,10], index: 11, kind: input, shape index: {}]
  %s12 = inlined_call_operand.vmem [shape: f32[1,10], index: 12, kind: input, shape index: {}]
  %s13 = inlined_call_operand.vmem [shape: f32[8,10], index: 13, kind: output, shape index: {}]
  %s14 = sld [smem:[#allocation0]]
  $region66: #{_model5_forward_impl.1} parent=0
    _
  %s16 = ssub.s32 1, %s14
  %s17 = scalar_select 0, %s16, %s14
  $region1: #{_model5_forward_impl.1} parent=0
    #allocation2 [shape = 'u8[262144]{0}', space=vmem, size = 0x40000, scoped, tag = 'input window, operand 1, single buffered']
    #allocation3 [shape = 's32[1]{0}', space=sflag, size = 0x4, scoped, tag = 'scoped memory for _model5_forward_impl.1']
    %18 = vsyncpa [#allocation3], 0
    // Predicated region
    $region2: #{_model5_forward_impl.1} parent=1 // pred_check
      _
    $region3: #{_model5_forward_impl.1} parent=1 // pred_check_branch
      %20 = sbr.rel (0) target = $region5
    $region4: #{_model5_forward_impl.1} parent=1 // pred_region
      _
    $region5: #{_model5_forward_impl.1} parent=1 // pred_fallthru
      _
    // Predicated region
    $region6: #{_model5_forward_impl.1} parent=1 // pred_check
      _
    $region7: #{_model5_forward_impl.1} parent=1 // pred_check_branch
      %22 = sbr.rel (0) target = $region9
    $region8: #{_model5_forward_impl.1} parent=1 // pred_region
      %24 = vsyncadd [#allocation3], 0
      %s25 = sshll.u32 %s1, 4
      %s26 = int_to_ptr.hbm [resolvable:$true] %s25
      %s27 = sshll.u32 [#allocation2], 4
      %s28 = int_to_ptr.vmem [resolvable:$true] %s27
      %33 = dma.hbm_to_vmem [thread:$0]  %s26, 8192, %s28, [#allocation3], 64, 64, 4
    $region9: #{_model5_forward_impl.1} parent=1 // pred_fallthru
      _
    // Predicated region
    $region10: #{_model5_forward_impl.1} parent=1 // pred_check
      _
    $region11: #{_model5_forward_impl.1} parent=1 // pred_check_branch
      %35 = sbr.rel (0) target = $region13
    $region12: #{_model5_forward_impl.1} parent=1 // pred_region
      _
    $region13: #{_model5_forward_impl.1} parent=1 // pred_fallthru
      _
    // Predicated region
    $region14: #{_model5_forward_impl.1} parent=1 // pred_check
      _
    $region15: #{_model5_forward_impl.1} parent=1 // pred_check_branch
      %37 = sbr.rel (0) target = $region17
    $region16: #{_model5_forward_impl.1} parent=1 // pred_region
      _
    $region17: #{_model5_forward_impl.1} parent=1 // pred_fallthru
      _
    // Predicated region
    $region18: #{_model5_forward_impl.1} parent=1 // pred_check
      _
    $region19: #{_model5_forward_impl.1} parent=1 // pred_check_branch
      %39 = sbr.rel (0) target = $region21
    $region20: #{_model5_forward_impl.1} parent=1 // pred_region
      _
    $region21: #{_model5_forward_impl.1} parent=1 // pred_fallthru
      _
    // Predicated region
    $region22: #{_model5_forward_impl.1} parent=1 // pred_check
      _
    $region23: #{_model5_forward_impl.1} parent=1 // pred_check_branch
      %41 = sbr.rel (0) target = $region25
    $region24: #{_model5_forward_impl.1} parent=1 // pred_region
      _
    $region25: #{_model5_forward_impl.1} parent=1 // pred_fallthru
      _
    // Predicated region
    $region26: #{_model5_forward_impl.1} parent=1 // pred_check
      _
    $region27: #{_model5_forward_impl.1} parent=1 // pred_check_branch
      %43 = sbr.rel (0) target = $region29
    $region28: #{_model5_forward_impl.1} parent=1 // pred_region
      _
    $region29: #{_model5_forward_impl.1} parent=1 // pred_fallthru
      _
    // Predicated region
    $region30: #{_model5_forward_impl.1} parent=1 // pred_check
      _
    $region31: #{_model5_forward_impl.1} parent=1 // pred_check_branch
      %45 = sbr.rel (0) target = $region33
    $region32: #{_model5_forward_impl.1} parent=1 // pred_region
      _
    $region33: #{_model5_forward_impl.1} parent=1 // pred_fallthru
      _
    // Predicated region
    $region34: #{_model5_forward_impl.1} parent=1 // pred_check
      _
    $region35: #{_model5_forward_impl.1} parent=1 // pred_check_branch
      %47 = sbr.rel (0) target = $region37
    $region36: #{_model5_forward_impl.1} parent=1 // pred_region
      _
    $region37: #{_model5_forward_impl.1} parent=1 // pred_fallthru
      _
    // Predicated region
    $region38: #{_model5_forward_impl.1} parent=1 // pred_check
      _
    $region39: #{_model5_forward_impl.1} parent=1 // pred_check_branch
      %49 = sbr.rel (0) target = $region41
    $region40: #{_model5_forward_impl.1} parent=1 // pred_region
      _
    $region41: #{_model5_forward_impl.1} parent=1 // pred_fallthru
      _
    // Predicated region
    $region42: #{_model5_forward_impl.1} parent=1 // pred_check
      _
    $region43: #{_model5_forward_impl.1} parent=1 // pred_check_branch
      %51 = sbr.rel (0) target = $region45
    $region44: #{_model5_forward_impl.1} parent=1 // pred_region
      _
    $region45: #{_model5_forward_impl.1} parent=1 // pred_fallthru
      _
    // Predicated region
    $region46: #{_model5_forward_impl.1} parent=1 // pred_check
      _
    $region47: #{_model5_forward_impl.1} parent=1 // pred_check_branch
      %53 = sbr.rel (0) target = $region49
    $region48: #{_model5_forward_impl.1} parent=1 // pred_region
      _
    $region49: #{_model5_forward_impl.1} parent=1 // pred_fallthru
      _
    // Predicated region
    $region50: #{_model5_forward_impl.1} parent=1 // pred_check
      _
    $region51: #{_model5_forward_impl.1} parent=1 // pred_check_branch
      %55 = sbr.rel (0) target = $region53
    $region52: #{_model5_forward_impl.1} parent=1 // pred_region
      _
    $region53: #{_model5_forward_impl.1} parent=1 // pred_fallthru
      _
    // Predicated region
    $region54: #{_model5_forward_impl.1} parent=1 // pred_check
      _
    $region55: #{_model5_forward_impl.1} parent=1 // pred_check_branch
      %57 = sbr.rel (0) target = $region57
    $region56: #{_model5_forward_impl.1} parent=1 // pred_region
      %59 = dma.done [#allocation3], 8192
    $region57: #{_model5_forward_impl.1} parent=1 // pred_fallthru
      _
    %v61 = vld [vmem:[%s0] sm:$0xff]
    %v62 = vld [vmem:[%s0 + $0x8] sm:$0xff]
    %v63 = vld [vmem:[%s0 + $0x10] sm:$0xff]
    %v64 = vld [vmem:[%s0 + $0x18] sm:$0xff]
    %v65 = vld [vmem:[#allocation2] sm:$0xf]
    %v66 = vld [vmem:[#allocation2 + $0x4] sm:$0xf]
    %v67 = vld [vmem:[#allocation2 + $0x8] sm:$0xf]
    %v68 = vld [vmem:[#allocation2 + $0xc] sm:$0xf]
    %v69 = vld [vmem:[#allocation2 + $0x10] sm:$0xf]
    %v70 = vld [vmem:[#allocation2 + $0x14] sm:$0xf]
    %v71 = vld [vmem:[#allocation2 + $0x18] sm:$0xf]
    %v72 = vld [vmem:[#allocation2 + $0x1c] sm:$0xf]
    %v73 = vld [vmem:[#allocation2 + $0x20] sm:$0xf]
    %v74 = vld [vmem:[#allocation2 + $0x24] sm:$0xf]
    %v75 = vld [vmem:[#allocation2 + $0x28] sm:$0xf]
    %v76 = vld [vmem:[#allocation2 + $0x2c] sm:$0xf]
    %v77 = vld [vmem:[#allocation2 + $0x30] sm:$0xf]
    %v78 = vld [vmem:[#allocation2 + $0x34] sm:$0xf]
    %v79 = vld [vmem:[#allocation2 + $0x38] sm:$0xf]
    %v80 = vld [vmem:[#allocation2 + $0x3c] sm:$0xf]
    %v81 = vld [vmem:[#allocation2 + $0x40] sm:$0xf]
    %v82 = vld [vmem:[#allocation2 + $0x44] sm:$0xf]
    %v83 = vld [vmem:[#allocation2 + $0x48] sm:$0xf]
    %v84 = vld [vmem:[#allocation2 + $0x4c] sm:$0xf]
    %v85 = vld [vmem:[#allocation2 + $0x50] sm:$0xf]
    %v86 = vld [vmem:[#allocation2 + $0x54] sm:$0xf]
    %v87 = vld [vmem:[#allocation2 + $0x58] sm:$0xf]
    %v88 = vld [vmem:[#allocation2 + $0x5c] sm:$0xf]
    %v89 = vld [vmem:[#allocation2 + $0x60] sm:$0xf]
    %v90 = vld [vmem:[#allocation2 + $0x64] sm:$0xf]
    %v91 = vld [vmem:[#allocation2 + $0x68] sm:$0xf]
    %v92 = vld [vmem:[#allocation2 + $0x6c] sm:$0xf]
    %v93 = vld [vmem:[#allocation2 + $0x70] sm:$0xf]
    %v94 = vld [vmem:[#allocation2 + $0x74] sm:$0xf]
    %v95 = vld [vmem:[#allocation2 + $0x78] sm:$0xf]
    %v96 = vld [vmem:[#allocation2 + $0x7c] sm:$0xf]
    %v97 = vld [vmem:[#allocation2 + $0x80] sm:$0xf]
    %v98 = vld [vmem:[#allocation2 + $0x84] sm:$0xf]
    %v99 = vld [vmem:[#allocation2 + $0x88] sm:$0xf]
    %v100 = vld [vmem:[#allocation2 + $0x8c] sm:$0xf]
    %v101 = vld [vmem:[#allocation2 + $0x90] sm:$0xf]
    %v102 = vld [vmem:[#allocation2 + $0x94] sm:$0xf]
    %v103 = vld [vmem:[#allocation2 + $0x98] sm:$0xf]
    %v104 = vld [vmem:[#allocation2 + $0x9c] sm:$0xf]
    %v105 = vld [vmem:[#allocation2 + $0xa0] sm:$0xf]
    %v106 = vld [vmem:[#allocation2 + $0xa4] sm:$0xf]
    %v107 = vld [vmem:[#allocation2 + $0xa8] sm:$0xf]
    %v108 = vld [vmem:[#allocation2 + $0xac] sm:$0xf]
    %v109 = vld [vmem:[#allocation2 + $0xb0] sm:$0xf]
    %v110 = vld [vmem:[#allocation2 + $0xb4] sm:$0xf]
    %v111 = vld [vmem:[#allocation2 + $0xb8] sm:$0xf]
    %v112 = vld [vmem:[#allocation2 + $0xbc] sm:$0xf]
    %v113 = vld [vmem:[#allocation2 + $0xc0] sm:$0xf]
    %v114 = vld [vmem:[#allocation2 + $0xc4] sm:$0xf]
    %v115 = vld [vmem:[#allocation2 + $0xc8] sm:$0xf]
    %v116 = vld [vmem:[#allocation2 + $0xcc] sm:$0xf]
    %v117 = vld [vmem:[#allocation2 + $0xd0] sm:$0xf]
    %v118 = vld [vmem:[#allocation2 + $0xd4] sm:$0xf]
    %v119 = vld [vmem:[#allocation2 + $0xd8] sm:$0xf]
    %v120 = vld [vmem:[#allocation2 + $0xdc] sm:$0xf]
    %v121 = vld [vmem:[#allocation2 + $0xe0] sm:$0xf]
    %v122 = vld [vmem:[#allocation2 + $0xe4] sm:$0xf]
    %v123 = vld [vmem:[#allocation2 + $0xe8] sm:$0xf]
    %v124 = vld [vmem:[#allocation2 + $0xec] sm:$0xf]
    %v125 = vld [vmem:[#allocation2 + $0xf0] sm:$0xf]
    %v126 = vld [vmem:[#allocation2 + $0xf4] sm:$0xf]
    %v127 = vld [vmem:[#allocation2 + $0xf8] sm:$0xf]
    %v128 = vld [vmem:[#allocation2 + $0xfc] sm:$0xf]
    %v129 = vld [vmem:[#allocation2 + $0x100] sm:$0xf]
    %v130 = vld [vmem:[#allocation2 + $0x104] sm:$0xf]
    %v131 = vld [vmem:[#allocation2 + $0x108] sm:$0xf]
    %v132 = vld [vmem:[#allocation2 + $0x10c] sm:$0xf]
    %v133 = vld [vmem:[#allocation2 + $0x110] sm:$0xf]
    %v134 = vld [vmem:[#allocation2 + $0x114] sm:$0xf]
    %v135 = vld [vmem:[#allocation2 + $0x118] sm:$0xf]
    %v136 = vld [vmem:[#allocation2 + $0x11c] sm:$0xf]
    %v137 = vld [vmem:[#allocation2 + $0x120] sm:$0xf]
    %v138 = vld [vmem:[#allocation2 + $0x124] sm:$0xf]
    %v139 = vld [vmem:[#allocation2 + $0x128] sm:$0xf]
    %v140 = vld [vmem:[#allocation2 + $0x12c] sm:$0xf]
    %v141 = vld [vmem:[#allocation2 + $0x130] sm:$0xf]
    %v142 = vld [vmem:[#allocation2 + $0x134] sm:$0xf]
    %v143 = vld [vmem:[#allocation2 + $0x138] sm:$0xf]
    %v144 = vld [vmem:[#allocation2 + $0x13c] sm:$0xf]
    %v145 = vld [vmem:[#allocation2 + $0x140] sm:$0xf]
    %v146 = vld [vmem:[#allocation2 + $0x144] sm:$0xf]
    %v147 = vld [vmem:[#allocation2 + $0x148] sm:$0xf]
    %v148 = vld [vmem:[#allocation2 + $0x14c] sm:$0xf]
    %v149 = vld [vmem:[#allocation2 + $0x150] sm:$0xf]
    %v150 = vld [vmem:[#allocation2 + $0x154] sm:$0xf]
    %v151 = vld [vmem:[#allocation2 + $0x158] sm:$0xf]
    %v152 = vld [vmem:[#allocation2 + $0x15c] sm:$0xf]
    %v153 = vld [vmem:[#allocation2 + $0x160] sm:$0xf]
    %v154 = vld [vmem:[#allocation2 + $0x164] sm:$0xf]
    %v155 = vld [vmem:[#allocation2 + $0x168] sm:$0xf]
    %v156 = vld [vmem:[#allocation2 + $0x16c] sm:$0xf]
    %v157 = vld [vmem:[#allocation2 + $0x170] sm:$0xf]
    %v158 = vld [vmem:[#allocation2 + $0x174] sm:$0xf]
    %v159 = vld [vmem:[#allocation2 + $0x178] sm:$0xf]
    %v160 = vld [vmem:[#allocation2 + $0x17c] sm:$0xf]
    %v161 = vld [vmem:[#allocation2 + $0x180] sm:$0xf]
    %v162 = vld [vmem:[#allocation2 + $0x184] sm:$0xf]
    %v163 = vld [vmem:[#allocation2 + $0x188] sm:$0xf]
    %v164 = vld [vmem:[#allocation2 + $0x18c] sm:$0xf]
    %v165 = vld [vmem:[#allocation2 + $0x190] sm:$0xf]
    %v166 = vld [vmem:[#allocation2 + $0x194] sm:$0xf]
    %v167 = vld [vmem:[#allocation2 + $0x198] sm:$0xf]
    %v168 = vld [vmem:[#allocation2 + $0x19c] sm:$0xf]
    %v169 = vld [vmem:[#allocation2 + $0x1a0] sm:$0xf]
    %v170 = vld [vmem:[#allocation2 + $0x1a4] sm:$0xf]
    %v171 = vld [vmem:[#allocation2 + $0x1a8] sm:$0xf]
    %v172 = vld [vmem:[#allocation2 + $0x1ac] sm:$0xf]
    %v173 = vld [vmem:[#allocation2 + $0x1b0] sm:$0xf]
    %v174 = vld [vmem:[#allocation2 + $0x1b4] sm:$0xf]
    %v175 = vld [vmem:[#allocation2 + $0x1b8] sm:$0xf]
    %v176 = vld [vmem:[#allocation2 + $0x1bc] sm:$0xf]
    %v177 = vld [vmem:[#allocation2 + $0x1c0] sm:$0xf]
    %v178 = vld [vmem:[#allocation2 + $0x1c4] sm:$0xf]
    %v179 = vld [vmem:[#allocation2 + $0x1c8] sm:$0xf]
    %v180 = vld [vmem:[#allocation2 + $0x1cc] sm:$0xf]
    %v181 = vld [vmem:[#allocation2 + $0x1d0] sm:$0xf]
    %v182 = vld [vmem:[#allocation2 + $0x1d4] sm:$0xf]
    %v183 = vld [vmem:[#allocation2 + $0x1d8] sm:$0xf]
    %v184 = vld [vmem:[#allocation2 + $0x1dc] sm:$0xf]
    %v185 = vld [vmem:[#allocation2 + $0x1e0] sm:$0xf]
    %v186 = vld [vmem:[#allocation2 + $0x1e4] sm:$0xf]
    %v187 = vld [vmem:[#allocation2 + $0x1e8] sm:$0xf]
    %v188 = vld [vmem:[#allocation2 + $0x1ec] sm:$0xf]
    %v189 = vld [vmem:[#allocation2 + $0x1f0] sm:$0xf]
    %v190 = vld [vmem:[#allocation2 + $0x1f4] sm:$0xf]
    %v191 = vld [vmem:[#allocation2 + $0x1f8] sm:$0xf]
    %v192 = vld [vmem:[#allocation2 + $0x1fc] sm:$0xf]
    %v193 = vld [vmem:[%s2] sm:$0x1]
    %v195 = vperm.slane %v193, 0
    %v201 = vunpack.c.l.b16 %v61
    %v202 = vunpack.c.h.b16 %v61
    %v203 = vunpack.c.l.b16 %v62
    %v204 = vunpack.c.h.b16 %v62
    %v205 = vunpack.c.l.b16 %v63
    %v206 = vunpack.c.h.b16 %v63
    %v207 = vunpack.c.l.b16 %v64
    %v208 = vunpack.c.h.b16 %v64
    %v209 = vpack.c.b16 %v201, %v201
    %v210 = vpack.c.b16 %v202, %v202
    %v211 = vpack.c.b16 %v203, %v203
    %v212 = vpack.c.b16 %v204, %v204
    %v213 = vpack.c.b16 %v205, %v205
    %v214 = vpack.c.b16 %v206, %v206
    %v215 = vpack.c.b16 %v207, %v207
    %v216 = vpack.c.b16 %v208, %v208
    %v353 = vunpack.c.l.b16 %v65
    %v354 = vunpack.c.l.b16 %v66
    %v355 = vunpack.c.l.b16 %v67
    %v356 = vunpack.c.l.b16 %v68
    %v357 = vunpack.c.l.b16 %v69
    %v358 = vunpack.c.l.b16 %v70
    %v359 = vunpack.c.l.b16 %v71
    %v360 = vunpack.c.l.b16 %v72
    %v361 = vunpack.c.l.b16 %v73
    %v362 = vunpack.c.l.b16 %v74
    %v363 = vunpack.c.l.b16 %v75
    %v364 = vunpack.c.l.b16 %v76
    %v365 = vunpack.c.l.b16 %v77
    %v366 = vunpack.c.l.b16 %v78
    %v367 = vunpack.c.l.b16 %v79
    %v368 = vunpack.c.l.b16 %v80
    %v369 = vunpack.c.l.b16 %v81
    %v370 = vunpack.c.l.b16 %v82
    %v371 = vunpack.c.l.b16 %v83
    %v372 = vunpack.c.l.b16 %v84
    %v373 = vunpack.c.l.b16 %v85
    %v374 = vunpack.c.l.b16 %v86
    %v375 = vunpack.c.l.b16 %v87
    %v376 = vunpack.c.l.b16 %v88
    %v377 = vunpack.c.l.b16 %v89
    %v378 = vunpack.c.l.b16 %v90
    %v379 = vunpack.c.l.b16 %v91
    %v380 = vunpack.c.l.b16 %v92
    %v381 = vunpack.c.l.b16 %v93
    %v382 = vunpack.c.l.b16 %v94
    %v383 = vunpack.c.l.b16 %v95
    %v384 = vunpack.c.l.b16 %v96
    %v385 = vunpack.c.l.b16 %v97
    %v386 = vunpack.c.l.b16 %v98
    %v387 = vunpack.c.l.b16 %v99
    %v388 = vunpack.c.l.b16 %v100
    %v389 = vunpack.c.l.b16 %v101
    %v390 = vunpack.c.l.b16 %v102
    %v391 = vunpack.c.l.b16 %v103
    %v392 = vunpack.c.l.b16 %v104
    %v393 = vunpack.c.l.b16 %v105
    %v394 = vunpack.c.l.b16 %v106
    %v395 = vunpack.c.l.b16 %v107
    %v396 = vunpack.c.l.b16 %v108
    %v397 = vunpack.c.l.b16 %v109
    %v398 = vunpack.c.l.b16 %v110
    %v399 = vunpack.c.l.b16 %v111
    %v400 = vunpack.c.l.b16 %v112
    %v401 = vunpack.c.l.b16 %v113
    %v402 = vunpack.c.l.b16 %v114
    %v403 = vunpack.c.l.b16 %v115
    %v404 = vunpack.c.l.b16 %v116
    %v405 = vunpack.c.l.b16 %v117
    %v406 = vunpack.c.l.b16 %v118
    %v407 = vunpack.c.l.b16 %v119
    %v408 = vunpack.c.l.b16 %v120
    %v409 = vunpack.c.l.b16 %v121
    %v410 = vunpack.c.l.b16 %v122
    %v411 = vunpack.c.l.b16 %v123
    %v412 = vunpack.c.l.b16 %v124
    %v413 = vunpack.c.l.b16 %v125
    %v414 = vunpack.c.l.b16 %v126
    %v415 = vunpack.c.l.b16 %v127
    %v416 = vunpack.c.l.b16 %v128
    %v417 = vunpack.c.l.b16 %v129
    %v418 = vunpack.c.l.b16 %v130
    %v419 = vunpack.c.l.b16 %v131
    %v420 = vunpack.c.l.b16 %v132
    %v421 = vunpack.c.l.b16 %v133
    %v422 = vunpack.c.l.b16 %v134
    %v423 = vunpack.c.l.b16 %v135
    %v424 = vunpack.c.l.b16 %v136
    %v425 = vunpack.c.l.b16 %v137
    %v426 = vunpack.c.l.b16 %v138
    %v427 = vunpack.c.l.b16 %v139
    %v428 = vunpack.c.l.b16 %v140
    %v429 = vunpack.c.l.b16 %v141
    %v430 = vunpack.c.l.b16 %v142
    %v431 = vunpack.c.l.b16 %v143
    %v432 = vunpack.c.l.b16 %v144
    %v433 = vunpack.c.l.b16 %v145
    %v434 = vunpack.c.l.b16 %v146
    %v435 = vunpack.c.l.b16 %v147
    %v436 = vunpack.c.l.b16 %v148
    %v437 = vunpack.c.l.b16 %v149
    %v438 = vunpack.c.l.b16 %v150
    %v439 = vunpack.c.l.b16 %v151
    %v440 = vunpack.c.l.b16 %v152
    %v441 = vunpack.c.l.b16 %v153
    %v442 = vunpack.c.l.b16 %v154
    %v443 = vunpack.c.l.b16 %v155
    %v444 = vunpack.c.l.b16 %v156
    %v445 = vunpack.c.l.b16 %v157
    %v446 = vunpack.c.l.b16 %v158
    %v447 = vunpack.c.l.b16 %v159
    %v448 = vunpack.c.l.b16 %v160
    %v449 = vunpack.c.l.b16 %v161
    %v450 = vunpack.c.l.b16 %v162
    %v451 = vunpack.c.l.b16 %v163
    %v452 = vunpack.c.l.b16 %v164
    %v453 = vunpack.c.l.b16 %v165
    %v454 = vunpack.c.l.b16 %v166
    %v455 = vunpack.c.l.b16 %v167
    %v456 = vunpack.c.l.b16 %v168
    %v457 = vunpack.c.l.b16 %v169
    %v458 = vunpack.c.l.b16 %v170
    %v459 = vunpack.c.l.b16 %v171
    %v460 = vunpack.c.l.b16 %v172
    %v461 = vunpack.c.l.b16 %v173
    %v462 = vunpack.c.l.b16 %v174
    %v463 = vunpack.c.l.b16 %v175
    %v464 = vunpack.c.l.b16 %v176
    %v465 = vunpack.c.l.b16 %v177
    %v466 = vunpack.c.l.b16 %v178
    %v467 = vunpack.c.l.b16 %v179
    %v468 = vunpack.c.l.b16 %v180
    %v469 = vunpack.c.l.b16 %v181
    %v470 = vunpack.c.l.b16 %v182
    %v471 = vunpack.c.l.b16 %v183
    %v472 = vunpack.c.l.b16 %v184
    %v473 = vunpack.c.l.b16 %v185
    %v474 = vunpack.c.l.b16 %v186
    %v475 = vunpack.c.l.b16 %v187
    %v476 = vunpack.c.l.b16 %v188
    %v477 = vunpack.c.l.b16 %v189
    %v478 = vunpack.c.l.b16 %v190
    %v479 = vunpack.c.l.b16 %v191
    %v480 = vunpack.c.l.b16 %v192
    %v481 = vpack.c.b16 %v354, %v353
    %v482 = vpack.c.b16 %v356, %v355
    %v483 = vpack.c.b16 %v358, %v357
    %v484 = vpack.c.b16 %v360, %v359
    %v485 = vpack.c.b16 %v362, %v361
    %v486 = vpack.c.b16 %v364, %v363
    %v487 = vpack.c.b16 %v366, %v365
    %v488 = vpack.c.b16 %v368, %v367
    %v489 = vpack.c.b16 %v370, %v369
    %v490 = vpack.c.b16 %v372, %v371
    %v491 = vpack.c.b16 %v374, %v373
    %v492 = vpack.c.b16 %v376, %v375
    %v493 = vpack.c.b16 %v378, %v377
    %v494 = vpack.c.b16 %v380, %v379
    %v495 = vpack.c.b16 %v382, %v381
    %v496 = vpack.c.b16 %v384, %v383
    %v497 = vpack.c.b16 %v386, %v385
    %v498 = vpack.c.b16 %v388, %v387
    %v499 = vpack.c.b16 %v390, %v389
    %v500 = vpack.c.b16 %v392, %v391
    %v501 = vpack.c.b16 %v394, %v393
    %v502 = vpack.c.b16 %v396, %v395
    %v503 = vpack.c.b16 %v398, %v397
    %v504 = vpack.c.b16 %v400, %v399
    %v505 = vpack.c.b16 %v402, %v401
    %v506 = vpack.c.b16 %v404, %v403
    %v507 = vpack.c.b16 %v406, %v405
    %v508 = vpack.c.b16 %v408, %v407
    %v509 = vpack.c.b16 %v410, %v409
    %v510 = vpack.c.b16 %v412, %v411
    %v511 = vpack.c.b16 %v414, %v413
    %v512 = vpack.c.b16 %v416, %v415
    %v513 = vpack.c.b16 %v418, %v417
    %v514 = vpack.c.b16 %v420, %v419
    %v515 = vpack.c.b16 %v422, %v421
    %v516 = vpack.c.b16 %v424, %v423
    %v517 = vpack.c.b16 %v426, %v425
    %v518 = vpack.c.b16 %v428, %v427
    %v519 = vpack.c.b16 %v430, %v429
    %v520 = vpack.c.b16 %v432, %v431
    %v521 = vpack.c.b16 %v434, %v433
    %v522 = vpack.c.b16 %v436, %v435
    %v523 = vpack.c.b16 %v438, %v437
    %v524 = vpack.c.b16 %v440, %v439
    %v525 = vpack.c.b16 %v442, %v441
    %v526 = vpack.c.b16 %v444, %v443
    %v527 = vpack.c.b16 %v446, %v445
    %v528 = vpack.c.b16 %v448, %v447
    %v529 = vpack.c.b16 %v450, %v449
    %v530 = vpack.c.b16 %v452, %v451
    %v531 = vpack.c.b16 %v454, %v453
    %v532 = vpack.c.b16 %v456, %v455
    %v533 = vpack.c.b16 %v458, %v457
    %v534 = vpack.c.b16 %v460, %v459
    %v535 = vpack.c.b16 %v462, %v461
    %v536 = vpack.c.b16 %v464, %v463
    %v537 = vpack.c.b16 %v466, %v465
    %v538 = vpack.c.b16 %v468, %v467
    %v539 = vpack.c.b16 %v470, %v469
    %v540 = vpack.c.b16 %v472, %v471
    %v541 = vpack.c.b16 %v474, %v473
    %v542 = vpack.c.b16 %v476, %v475
    %v543 = vpack.c.b16 %v478, %v477
    %v544 = vpack.c.b16 %v480, %v479
    %609 = vmatpush.bf16.msra.mxu0 %v488
    %610 = vmatpush.bf16.msra.mxu0 %v487
    %611 = vmatpush.bf16.msra.mxu0 %v486
    %612 = vmatpush.bf16.msra.mxu0 %v485
    %613 = vmatpush.bf16.msra.mxu0 %v484
    %614 = vmatpush.bf16.msra.mxu0 %v483
    %615 = vmatpush.bf16.msra.mxu0 %v482
    %616 = vmatpush.bf16.msra.mxu0 %v481
    %617 = vmatmul.bf16.gmra.mxu0 %v209
    %v618 = vpop.f32.mrf.mxu0
    %v619 = vadd.f32 %v195, %v618
    %v620 = vpop.f32.mrf.mxu0
    %621 = vdwg.mxu0
    %622 = vmatpush.bf16.msra.mxu0 %v496
    %623 = vmatpush.bf16.msra.mxu0 %v495
    %624 = vmatpush.bf16.msra.mxu0 %v494
    %625 = vmatpush.bf16.msra.mxu0 %v493
    %626 = vmatpush.bf16.msra.mxu0 %v492
    %627 = vmatpush.bf16.msra.mxu0 %v491
    %628 = vmatpush.bf16.msra.mxu0 %v490
    %629 = vmatpush.bf16.msra.mxu0 %v489
    %630 = vmatmul.bf16.gmra.mxu0 %v210
    %v631 = vpop.f32.mrf.mxu0
    %v632 = vadd.f32 %v619, %v631
    %v633 = vpop.f32.mrf.mxu0
    %634 = vdwg.mxu0
    %635 = vmatpush.bf16.msra.mxu0 %v504
    %636 = vmatpush.bf16.msra.mxu0 %v503
    %637 = vmatpush.bf16.msra.mxu0 %v502
    %638 = vmatpush.bf16.msra.mxu0 %v501
    %639 = vmatpush.bf16.msra.mxu0 %v500
    %640 = vmatpush.bf16.msra.mxu0 %v499
    %641 = vmatpush.bf16.msra.mxu0 %v498
    %642 = vmatpush.bf16.msra.mxu0 %v497
    %643 = vmatmul.bf16.gmra.mxu0 %v211
    %v644 = vpop.f32.mrf.mxu0
    %v645 = vadd.f32 %v632, %v644
    %v646 = vpop.f32.mrf.mxu0
    %647 = vdwg.mxu0
    %648 = vmatpush.bf16.msra.mxu0 %v512
    %649 = vmatpush.bf16.msra.mxu0 %v511
    %650 = vmatpush.bf16.msra.mxu0 %v510
    %651 = vmatpush.bf16.msra.mxu0 %v509
    %652 = vmatpush.bf16.msra.mxu0 %v508
    %653 = vmatpush.bf16.msra.mxu0 %v507
    %654 = vmatpush.bf16.msra.mxu0 %v506
    %655 = vmatpush.bf16.msra.mxu0 %v505
    %656 = vmatmul.bf16.gmra.mxu0 %v212
    %v657 = vpop.f32.mrf.mxu0
    %v658 = vadd.f32 %v645, %v657
    %v659 = vpop.f32.mrf.mxu0
    %660 = vdwg.mxu0
    %661 = vmatpush.bf16.msra.mxu0 %v520
    %662 = vmatpush.bf16.msra.mxu0 %v519
    %663 = vmatpush.bf16.msra.mxu0 %v518
    %664 = vmatpush.bf16.msra.mxu0 %v517
    %665 = vmatpush.bf16.msra.mxu0 %v516
    %666 = vmatpush.bf16.msra.mxu0 %v515
    %667 = vmatpush.bf16.msra.mxu0 %v514
    %668 = vmatpush.bf16.msra.mxu0 %v513
    %669 = vmatmul.bf16.gmra.mxu0 %v213
    %v670 = vpop.f32.mrf.mxu0
    %v671 = vadd.f32 %v658, %v670
    %v672 = vpop.f32.mrf.mxu0
    %673 = vdwg.mxu0
    %674 = vmatpush.bf16.msra.mxu0 %v528
    %675 = vmatpush.bf16.msra.mxu0 %v527
    %676 = vmatpush.bf16.msra.mxu0 %v526
    %677 = vmatpush.bf16.msra.mxu0 %v525
    %678 = vmatpush.bf16.msra.mxu0 %v524
    %679 = vmatpush.bf16.msra.mxu0 %v523
    %680 = vmatpush.bf16.msra.mxu0 %v522
    %681 = vmatpush.bf16.msra.mxu0 %v521
    %682 = vmatmul.bf16.gmra.mxu0 %v214
    %v683 = vpop.f32.mrf.mxu0
    %v684 = vadd.f32 %v671, %v683
    %v685 = vpop.f32.mrf.mxu0
    %686 = vdwg.mxu0
    %687 = vmatpush.bf16.msra.mxu0 %v536
    %688 = vmatpush.bf16.msra.mxu0 %v535
    %689 = vmatpush.bf16.msra.mxu0 %v534
    %690 = vmatpush.bf16.msra.mxu0 %v533
    %691 = vmatpush.bf16.msra.mxu0 %v532
    %692 = vmatpush.bf16.msra.mxu0 %v531
    %693 = vmatpush.bf16.msra.mxu0 %v530
    %694 = vmatpush.bf16.msra.mxu0 %v529
    %695 = vmatmul.bf16.gmra.mxu0 %v215
    %v696 = vpop.f32.mrf.mxu0
    %v697 = vadd.f32 %v684, %v696
    %v698 = vpop.f32.mrf.mxu0
    %699 = vdwg.mxu0
    %700 = vmatpush.bf16.msra.mxu0 %v544
    %701 = vmatpush.bf16.msra.mxu0 %v543
    %702 = vmatpush.bf16.msra.mxu0 %v542
    %703 = vmatpush.bf16.msra.mxu0 %v541
    %704 = vmatpush.bf16.msra.mxu0 %v540
    %705 = vmatpush.bf16.msra.mxu0 %v539
    %706 = vmatpush.bf16.msra.mxu0 %v538
    %707 = vmatpush.bf16.msra.mxu0 %v537
    %708 = vmatmul.bf16.gmra.mxu0 %v216
    %v709 = vpop.f32.mrf.mxu0
    %v710 = vadd.f32 %v697, %v709
    %v711 = vpop.f32.mrf.mxu0
    %712 = vdwg.mxu0
    %v713 = vmax.f32 %v710, 0.0
    %v714 = vpack.c.bf16 %v713, %v713
    %v715 = vld [vmem:[%s3] sm:$0xf]
    %v716 = vld [vmem:[%s3 + $0x4] sm:$0xf]
    %v717 = vld [vmem:[%s3 + $0x8] sm:$0xf]
    %v718 = vld [vmem:[%s3 + $0xc] sm:$0xf]
    %v719 = vld [vmem:[%s3 + $0x10] sm:$0xf]
    %v720 = vld [vmem:[%s3 + $0x14] sm:$0xf]
    %v721 = vld [vmem:[%s3 + $0x18] sm:$0xf]
    %v722 = vld [vmem:[%s3 + $0x1c] sm:$0xf]
    %v723 = vld [vmem:[%s3 + $0x20] sm:$0xf]
    %v724 = vld [vmem:[%s3 + $0x24] sm:$0xf]
    %v725 = vld [vmem:[%s3 + $0x28] sm:$0xf]
    %v726 = vld [vmem:[%s3 + $0x2c] sm:$0xf]
    %v727 = vld [vmem:[%s3 + $0x30] sm:$0xf]
    %v728 = vld [vmem:[%s3 + $0x34] sm:$0xf]
    %v729 = vld [vmem:[%s3 + $0x38] sm:$0xf]
    %v730 = vld [vmem:[%s3 + $0x3c] sm:$0xf]
    %v731 = vld [vmem:[%s4] sm:$0x1]
    %v733 = vperm.slane %v731, 0
    %v751 = vunpack.c.l.b16 %v715
    %v752 = vunpack.c.l.b16 %v716
    %v753 = vunpack.c.l.b16 %v717
    %v754 = vunpack.c.l.b16 %v718
    %v755 = vunpack.c.l.b16 %v719
    %v756 = vunpack.c.l.b16 %v720
    %v757 = vunpack.c.l.b16 %v721
    %v758 = vunpack.c.l.b16 %v722
    %v759 = vunpack.c.l.b16 %v723
    %v760 = vunpack.c.l.b16 %v724
    %v761 = vunpack.c.l.b16 %v725
    %v762 = vunpack.c.l.b16 %v726
    %v763 = vunpack.c.l.b16 %v727
    %v764 = vunpack.c.l.b16 %v728
    %v765 = vunpack.c.l.b16 %v729
    %v766 = vunpack.c.l.b16 %v730
    %v767 = vpack.c.b16 %v752, %v751
    %v768 = vpack.c.b16 %v754, %v753
    %v769 = vpack.c.b16 %v756, %v755
    %v770 = vpack.c.b16 %v758, %v757
    %v771 = vpack.c.b16 %v760, %v759
    %v772 = vpack.c.b16 %v762, %v761
    %v773 = vpack.c.b16 %v764, %v763
    %v774 = vpack.c.b16 %v766, %v765
    %783 = vmatpush.bf16.msra.mxu0 %v774
    %784 = vmatpush.bf16.msra.mxu0 %v773
    %785 = vmatpush.bf16.msra.mxu0 %v772
    %786 = vmatpush.bf16.msra.mxu0 %v771
    %787 = vmatpush.bf16.msra.mxu0 %v770
    %788 = vmatpush.bf16.msra.mxu0 %v769
    %789 = vmatpush.bf16.msra.mxu0 %v768
    %790 = vmatpush.bf16.msra.mxu0 %v767
    %791 = vmatmul.bf16.gmra.mxu0 %v714
    %v792 = vpop.f32.mrf.mxu0
    %v793 = vadd.f32 %v733, %v792
    %v794 = vpop.f32.mrf.mxu0
    %795 = vdwg.mxu0
    %v796 = vmax.f32 %v793, 0.0
    %v797 = vpack.c.bf16 %v796, %v796
    %v798 = vld [vmem:[%s5] sm:$0xf]
    %v799 = vld [vmem:[%s5 + $0x4] sm:$0xf]
    %v800 = vld [vmem:[%s5 + $0x8] sm:$0xf]
    %v801 = vld [vmem:[%s5 + $0xc] sm:$0xf]
    %v802 = vld [vmem:[%s5 + $0x10] sm:$0xf]
    %v803 = vld [vmem:[%s5 + $0x14] sm:$0xf]
    %v804 = vld [vmem:[%s5 + $0x18] sm:$0xf]
    %v805 = vld [vmem:[%s5 + $0x1c] sm:$0xf]
    %v806 = vld [vmem:[%s6] sm:$0x1]
    %v808 = vperm.slane %v806, 0
    %v818 = vunpack.c.l.b16 %v798
    %v819 = vunpack.c.l.b16 %v799
    %v820 = vunpack.c.l.b16 %v800
    %v821 = vunpack.c.l.b16 %v801
    %v822 = vunpack.c.l.b16 %v802
    %v823 = vunpack.c.l.b16 %v803
    %v824 = vunpack.c.l.b16 %v804
    %v825 = vunpack.c.l.b16 %v805
    %v826 = vpack.c.b16 %v819, %v818
    %v827 = vpack.c.b16 %v821, %v820
    %v828 = vpack.c.b16 %v823, %v822
    %v829 = vpack.c.b16 %v825, %v824
    %vm834 = vcmask 523264
    %v836 = vsel %vm834, %v797, 0
    %838 = vmatpush.bf16.msra.mxu0 0
    %839 = vmatpush.bf16.msra.mxu0 0
    %840 = vmatpush.bf16.msra.mxu0 0
    %841 = vmatpush.bf16.msra.mxu0 0
    %842 = vmatpush.bf16.msra.mxu0 %v829
    %843 = vmatpush.bf16.msra.mxu0 %v828
    %844 = vmatpush.bf16.msra.mxu0 %v827
    %845 = vmatpush.bf16.msra.mxu0 %v826
    %846 = vmatmul.bf16.gmra.mxu0 %v836
    %v847 = vpop.f32.mrf.mxu0
    %v848 = vadd.f32 %v808, %v847
    %v849 = vpop.f32.mrf.mxu0
    %850 = vdwg.mxu0
    %v851 = vmax.f32 %v848, 0.0
    %v852 = vpack.c.bf16 %v851, %v851
    %v853 = vld [vmem:[%s7] sm:$0xf]
    %v854 = vld [vmem:[%s7 + $0x4] sm:$0x1]
    %v855 = vld [vmem:[%s8] sm:$0x1]
    %v857 = vperm.slane %v855, 0
    %v861 = vunpack.c.l.b16 %v853
    %v862 = vunpack.c.l.b16 %v854
    %v863 = vpack.c.b16 %v862, %v861
    %vm864 = vcmask 80896
    %v866 = vsel %vm864, %v852, 0
    %vm868 = vcmask 1044480
    %v870 = vsel %vm868, %v863, 0
    %872 = vmatpush.bf16.msra.mxu0 0
    %873 = vmatpush.bf16.msra.mxu0 0
    %874 = vmatpush.bf16.msra.mxu0 0
    %875 = vmatpush.bf16.msra.mxu0 0
    %876 = vmatpush.bf16.msra.mxu0 0
    %877 = vmatpush.bf16.msra.mxu0 0
    %878 = vmatpush.bf16.msra.mxu0 0
    %879 = vmatpush.bf16.msra.mxu0 %v870
    %880 = vmatmul.bf16.gmra.mxu0 %v866
    %v881 = vpop.f32.mrf.mxu0
    %v882 = vadd.f32 %v857, %v881
    %v883 = vpop.f32.mrf.mxu0
    %884 = vdwg.mxu0
    %v885 = vmax.f32 %v882, 0.0
    %v886 = vpack.c.bf16 %v885, %v885
    %v887 = vld [vmem:[%s9] sm:$0xf]
    %v888 = vld [vmem:[%s9 + $0x4] sm:$0x1]
    %v889 = vld [vmem:[%s10] sm:$0x1]
    %v891 = vperm.slane %v889, 0
    %v895 = vunpack.c.l.b16 %v887
    %v896 = vunpack.c.l.b16 %v888
    %v897 = vpack.c.b16 %v896, %v895
    %v899 = vsel %vm864, %v886, 0
    %v902 = vsel %vm868, %v897, 0
    %904 = vmatpush.bf16.msra.mxu0 0
    %905 = vmatpush.bf16.msra.mxu0 0
    %906 = vmatpush.bf16.msra.mxu0 0
    %907 = vmatpush.bf16.msra.mxu0 0
    %908 = vmatpush.bf16.msra.mxu0 0
    %909 = vmatpush.bf16.msra.mxu0 0
    %910 = vmatpush.bf16.msra.mxu0 0
    %911 = vmatpush.bf16.msra.mxu0 %v902
    %912 = vmatmul.bf16.gmra.mxu0 %v899
    %v913 = vpop.f32.mrf.mxu0
    %v914 = vadd.f32 %v891, %v913
    %v915 = vpop.f32.mrf.mxu0
    %916 = vdwg.mxu0
    %v917 = vmax.f32 %v914, 0.0
    %v918 = vpack.c.bf16 %v917, %v917
    %v919 = vld [vmem:[%s11] sm:$0xf]
    %v920 = vld [vmem:[%s11 + $0x4] sm:$0x1]
    %v921 = vld [vmem:[%s12] sm:$0x1]
    %v923 = vperm.slane %v921, 0
    %v927 = vunpack.c.l.b16 %v919
    %v928 = vunpack.c.l.b16 %v920
    %v929 = vpack.c.b16 %v928, %v927
    %v931 = vsel %vm864, %v918, 0
    %v934 = vsel %vm868, %v929, 0
    %936 = vmatpush.bf16.msra.mxu0 0
    %937 = vmatpush.bf16.msra.mxu0 0
    %938 = vmatpush.bf16.msra.mxu0 0
    %939 = vmatpush.bf16.msra.mxu0 0
    %940 = vmatpush.bf16.msra.mxu0 0
    %941 = vmatpush.bf16.msra.mxu0 0
    %942 = vmatpush.bf16.msra.mxu0 0
    %943 = vmatpush.bf16.msra.mxu0 %v934
    %944 = vmatmul.bf16.gmra.mxu0 %v931
    %v945 = vpop.f32.mrf.mxu0
    %v946 = vadd.f32 %v923, %v945
    %v947 = vpop.f32.mrf.mxu0
    %948 = vdwg.mxu0
    %v949 = vsel %vm864, %v946, -inf
    %950 = vmax.xlane.f32.xlu0 %v949
    %v951 = vpop.xlane.xlu0 %950
    %v952 = vsub.f32 %v946, %v951
    %v953 = vmul.f32 %v952, 1.442695
    %v954 = vpow.pop %v953
    %v955 = vsel %vm864, %v954, 0.0
    %956 = vadd.xlane.f32.xlu0 %v955
    %v957 = vpop.xlane.xlu0 %956
    %v958 = vlog2.pop %v957
    %v959 = vmul.f32 %v958, 0.6931472
    %v960 = vsub.f32 %v952, %v959
    %961 = vst.msk [vmem:[%s13] sm:$0xff] %vm864, %v960
    // Predicated region
    $region58: #{_model5_forward_impl.1} parent=1 // pred_check
      _
    $region59: #{_model5_forward_impl.1} parent=1 // pred_check_branch
      %963 = sbr.rel (0) target = $region61
    $region60: #{_model5_forward_impl.1} parent=1 // pred_region
      _
    $region61: #{_model5_forward_impl.1} parent=1 // pred_fallthru
      _
    // Predicated region
    $region62: #{_model5_forward_impl.1} parent=1 // pred_check
      _
    $region63: #{_model5_forward_impl.1} parent=1 // pred_check_branch
      %965 = sbr.rel (0) target = $region65
    $region64: #{_model5_forward_impl.1} parent=1 // pred_region
      _
    $region65: #{_model5_forward_impl.1} parent=1 // pred_fallthru
      _
    %966 = vsyncpa [#allocation3], 1

</llo_original>
